<compile_context>
chip_gen: v7x
topology: tpu7x:2x2x1
jax: 0.10.0
libtpu: 0.0.40
codegen_flags: <defaults>
</compile_context>

<pallas_src>
import functools

import jax
import jax.numpy as jnp
from jax.experimental import pallas as pl
from jax.experimental.pallas import tpu as pltpu

_LOG2 = 0.6931471805599453


def _ssp(x):
    # ShiftedSoftplus: softplus(x) - log(2), numerically stable.
    return jnp.maximum(x, 0.0) + jnp.log1p(jnp.exp(-jnp.abs(x))) - _LOG2


def _round_up(x, m):
    return (x + m - 1) // m * m


# ----------------------------------------------------------------------------
# Kernel: one grid step = one (graph, layer) pair.  Layer axis is "arbitrary"
# (state carried in VMEM scratch); batch axis is "parallel" (v7x megacore).
# ----------------------------------------------------------------------------
def _hvnet_layer_kernel(n_types, feat,
                        adj_ref, s0_ref, nmask_ref,
                        w1_ref, b1_ref, w2_ref, b2_ref, sb2_ref,
                        fw1_ref, fb1_ref, fw2_ref, fb2_ref,
                        out_ref, s_ref):
    f32 = jnp.float32
    bf16 = jnp.bfloat16
    layer = pl.program_id(1)
    n_layers = pl.num_programs(1)
    inv_t = 1.0 / n_types

    # Load this graph's scalar node state at its first layer.
    @pl.when(layer == 0)
    def _():
        s_ref[...] = s0_ref[...]

    s = s_ref[...]                       # (n_pad, f_pad) f32, VMEM-resident state
    adj = adj_ref[...]                   # (n_pad, n_pad) f32 0/1 in-edge adjacency
    nmask = nmask_ref[...]               # (n_pad, 1)  matched-type count (1 real, 0 pad)

    # Type-invariant message: bf16 operands (real lanes only), f32 accumulation.
    m = _ssp(jnp.dot(s[:, :feat].astype(bf16), w1_ref[...],
                     preferred_element_type=f32) + b1_ref[...])        # (n_pad, f_pad)
    # Shared aggregation over ALL in-edges (per-type masking applied analytically).
    agg = jnp.dot(adj, m, preferred_element_type=f32)                  # (n_pad, f_pad)
    z = jnp.dot(agg[:, :feat].astype(bf16), w2_ref[...],
                preferred_element_type=f32)                            # (n_pad, f_pad)

    # Mean over node types of  srst_t = s + ssp(mask_t * z + b2):
    #   each real node matches exactly one type, padded rows match none, so
    #   sum_t ssp(mask_t*z + b2) = nmask*ssp(z+b2) + (T - nmask)*ssp(b2).
    s_new = s + inv_t * (nmask * _ssp(z + b2_ref[...])
                         + (n_types - nmask) * sb2_ref[...])
    s_ref[...] = s_new

    # Readout at the last layer: SumPooling over valid nodes + fc head.
    @pl.when(layer == n_layers - 1)
    def _():
        pooled = jnp.sum(s_new * nmask, axis=0, keepdims=True)         # (1, f_pad)
        h = _ssp(jnp.dot(pooled[:, :feat].astype(bf16), fw1_ref[...],
                         preferred_element_type=f32) + fb1_ref[...])   # (1, f_pad)
        # nn.Dropout(0.5) is identity in eval mode.
        out_ref[...] = (jnp.dot(h[:, :feat], fw2_ref[...],
                                preferred_element_type=f32) + fb2_ref[...])


# ----------------------------------------------------------------------------
# Wrapper: padding / stacking of parameters + the pipelined pallas_call.
# ----------------------------------------------------------------------------
def disted_hvnet_forward(atom_type, adj_full, embed_table, layer_params, fc_params):
    """atom_type: (B, N) int; adj_full: (B, N, N) 0/1 in-edge adjacency."""
    B, N = atom_type.shape
    T, F = embed_table.shape
    L = len(layer_params)

    n_pad = _round_up(max(N, 8), 8)          # sublane alignment
    f_pad = _round_up(max(F, 128), 128)      # lane-dense output feature axis

    # s0 = embed(atomic_number); padded rows/lanes are zero (mathematically inert).
    s0 = jnp.take(embed_table, atom_type, axis=0).astype(jnp.float32)      # (B, N, F)
    s0 = jnp.pad(s0, ((0, 0), (0, n_pad - N), (0, f_pad - F)))

    # Adjacency stays f32 (tiny; avoids a mixed-precision MXU path).
    adj = jnp.pad(adj_full.astype(jnp.float32),
                  ((0, 0), (0, n_pad - N), (0, n_pad - N)))

    # Per-node matched-type count (1 for real nodes, 0 for padding) as a column.
    onehot = (atom_type[..., None] == jnp.arange(T)[None, None, :]).astype(jnp.float32)
    nmask = jnp.pad(jnp.sum(onehot, axis=-1, keepdims=True),
                    ((0, 0), (0, n_pad - N), (0, 0)))                      # (B, n_pad, 1)

    # bf16 weights: contraction (row) dim kept at its true size F, output dim
    # zero-padded to f_pad so results are lane-dense and padding is inert.
    def pad_w(w):
        return jnp.pad(w, ((0, 0), (0, f_pad - w.shape[1]))).astype(jnp.bfloat16)

    def pad_b(b):
        return jnp.pad(b, ((0, 0), (0, f_pad - b.shape[1]))).astype(jnp.float32)

    W1 = jnp.stack([pad_w(p[0]) for p in layer_params])      # (L, F, f_pad) bf16
    B1 = jnp.stack([pad_b(p[1]) for p in layer_params])      # (L, 1, f_pad) f32
    # p[2]/p[3] (gate weights) only fed the provably-zero vector channel: unused.
    W2 = jnp.stack([pad_w(p[4]) for p in layer_params])
    B2 = jnp.stack([pad_b(p[5]) for p in layer_params])
    SB2 = _ssp(B2)                                            # precomputed ssp(b2)

    fw1, fb1, fw2, fb2 = fc_params
    FW1 = pad_w(fw1)                                          # (F, f_pad) bf16
    FB1 = pad_b(fb1)                                          # (1, f_pad) f32
    FW2 = fw2.astype(jnp.float32)                             # (F, 1)
    FB2 = fb2.astype(jnp.float32)                             # (1, 1)

    def graph_spec(shape):                                    # per-graph, layer-invariant
        return pl.BlockSpec((None,) + shape, lambda b, l: (b, 0, 0))

    def layer_spec(shape):                                    # per-layer, pipelined
        return pl.BlockSpec((None,) + shape, lambda b, l: (l, 0, 0))

    def fixed_spec(shape):                                    # whole array, one block
        return pl.BlockSpec(shape, lambda b, l: (0,) * len(shape))

    kernel = functools.partial(_hvnet_layer_kernel, T, F)
    out = pl.pallas_call(
        kernel,
        out_shape=jax.ShapeDtypeStruct((B, 1, 1), jnp.float32),
        grid=(B, L),
        in_specs=[
            graph_spec((n_pad, n_pad)),    # adj
            graph_spec((n_pad, f_pad)),    # s0
            graph_spec((n_pad, 1)),        # nmask
            layer_spec((F, f_pad)),        # W1  (bf16)
            layer_spec((1, f_pad)),        # b1
            layer_spec((F, f_pad)),        # W2  (bf16)
            layer_spec((1, f_pad)),        # b2
            layer_spec((1, f_pad)),        # ssp(b2)
            fixed_spec((F, f_pad)),        # fc W1 (bf16)
            fixed_spec((1, f_pad)),        # fc b1
            fixed_spec((F, 1)),            # fc W2
            fixed_spec((1, 1)),            # fc b2
        ],
        out_specs=pl.BlockSpec((None, 1, 1), lambda b, l: (b, 0, 0)),
        scratch_shapes=[pltpu.VMEM((n_pad, f_pad), jnp.float32)],   # carried node state
        compiler_params=pltpu.CompilerParams(
            dimension_semantics=("parallel", "arbitrary")),
    )(adj, s0, nmask, W1, B1, W2, B2, SB2, FW1, FB1, FW2, FB2)
    return out.reshape(B, 1)


# ----------------------------------------------------------------------------
# Demo / smoke test.
# ----------------------------------------------------------------------------
def _init_layer(key, F):
    ks = jax.random.split(key, 6)
    scale = 0.1
    return (scale * jax.random.normal(ks[0], (F, F), jnp.float32),
            scale * jax.random.normal(ks[1], (1, F), jnp.float32),
            scale * jax.random.normal(ks[2], (F, F), jnp.float32),   # gate W (unused:
            scale * jax.random.normal(ks[3], (1, F), jnp.float32),   #  dead vector channel)
            scale * jax.random.normal(ks[4], (F, F), jnp.float32),
            scale * jax.random.normal(ks[5], (1, F), jnp.float32))


if __name__ == "__main__":
    key = jax.random.PRNGKey(0)
    B, N, F, T = 2, 16, 32, 2      # graphs, nodes/graph, in_feats, element types

    k_type, k_adj, k_emb, k_layers, k_fc = jax.random.split(key, 5)

    # Per-graph node element types and a random directed in-edge adjacency:
    # adj_full[b, i, j] = 1 iff graph b has an edge j -> i.
    atom_type = jax.random.randint(k_type, (B, N), 0, T)
    adj_full = (jax.random.uniform(k_adj, (B, N, N)) < 0.3).astype(jnp.float32)

    # Parameters (deterministic, synthetic).
    embed_table = 0.1 * jax.random.normal(k_emb, (T, F), jnp.float32)
    layer_keys = jax.random.split(k_layers, 4)
    layer_params = [_init_layer(k, F) for k in layer_keys]
    kf = jax.random.split(k_fc, 4)
    fc_params = (0.1 * jax.random.normal(kf[0], (F, F), jnp.float32),
                 0.1 * jax.random.normal(kf[1], (1, F), jnp.float32),
                 0.1 * jax.random.normal(kf[2], (F, 1), jnp.float32),
                 0.1 * jax.random.normal(kf[3], (1, 1), jnp.float32))

    fwd = jax.jit(disted_hvnet_forward)
    pred_e = fwd(atom_type, adj_full, embed_table, layer_params, fc_params)
    jax.block_until_ready(pred_e)
    assert pred_e.shape == (B, 1)
    print("KERNEL_OK")
</pallas_src>

<mosaic_0001>
module attributes {stable_mosaic.version = 11 : i64} {
  func.func @_hvnet_layer_kernel(%arg0: i32, %arg1: i32, %arg2: memref<1x16x16xf32, #tpu.memory_space<vmem>>, %arg3: memref<1x16x128xf32, #tpu.memory_space<vmem>>, %arg4: memref<1x16x1xf32, #tpu.memory_space<vmem>>, %arg5: memref<1x32x128xbf16, #tpu.memory_space<vmem>>, %arg6: memref<1x1x128xf32, #tpu.memory_space<vmem>>, %arg7: memref<1x32x128xbf16, #tpu.memory_space<vmem>>, %arg8: memref<1x1x128xf32, #tpu.memory_space<vmem>>, %arg9: memref<1x1x128xf32, #tpu.memory_space<vmem>>, %arg10: memref<32x128xbf16, #tpu.memory_space<vmem>>, %arg11: memref<1x128xf32, #tpu.memory_space<vmem>>, %arg12: memref<32x1xf32, #tpu.memory_space<vmem>>, %arg13: memref<1x1xf32, #tpu.memory_space<vmem>>, %arg14: memref<1x1x1xf32, #tpu.memory_space<vmem>>, %arg15: memref<16x128xf32, #tpu.memory_space<vmem>>) attributes {dimension_semantics = [#tpu.dimension_semantics<parallel>, #tpu.dimension_semantics<arbitrary>], iteration_bounds = array<i64: 2, 4>, scalar_prefetch = 0 : i64, scratch_operands = 1 : i64, tpu.core_type = #tpu.core_type<tc>, window_params = [{transform_indices = @transform_0, window_bounds = array<i64: 1, 16, 16>}, {transform_indices = @transform_1, window_bounds = array<i64: 1, 16, 128>}, {transform_indices = @transform_2, window_bounds = array<i64: 1, 16, 1>}, {transform_indices = @transform_3, window_bounds = array<i64: 1, 32, 128>}, {transform_indices = @transform_4, window_bounds = array<i64: 1, 1, 128>}, {transform_indices = @transform_5, window_bounds = array<i64: 1, 32, 128>}, {transform_indices = @transform_6, window_bounds = array<i64: 1, 1, 128>}, {transform_indices = @transform_7, window_bounds = array<i64: 1, 1, 128>}, {pipeline_mode = #tpu.pipeline_mode<synchronous>, transform_indices = @transform_8, window_bounds = array<i64: 32, 128>}, {pipeline_mode = #tpu.pipeline_mode<synchronous>, transform_indices = @transform_9, window_bounds = array<i64: 1, 128>}, {pipeline_mode = #tpu.pipeline_mode<synchronous>, transform_indices = @transform_10, window_bounds = array<i64: 32, 1>}, {pipeline_mode = #tpu.pipeline_mode<synchronous>, transform_indices = @transform_11, window_bounds = array<i64: 1, 1>}, {transform_indices = @transform_12, window_bounds = array<i64: 1, 1, 1>}]} {
    %c0_i32 = arith.constant 0 : i32
    %0 = arith.cmpi eq, %arg1, %c0_i32 : i32
    %1 = arith.extui %0 : i1 to i32
    %c0_i32_0 = arith.constant 0 : i32
    %2 = arith.cmpi ne, %1, %c0_i32_0 : i32
    scf.if %2 {
      %c0_36 = arith.constant 0 : index
      %c0_37 = arith.constant 0 : index
      %c0_38 = arith.constant 0 : index
      %64 = vector.load %arg3[%c0_36, %c0_37, %c0_38] : memref<1x16x128xf32, #tpu.memory_space<vmem>>, vector<1x16x128xf32>
      %65 = vector.shape_cast %64 : vector<1x16x128xf32> to vector<16x128xf32>
      %c0_39 = arith.constant 0 : index
      %c0_40 = arith.constant 0 : index
      %66 = vector.load %arg15[%c0_39, %c0_40] : memref<16x128xf32, #tpu.memory_space<vmem>>, vector<16x128xf32>
      tpu.vector_store %arg15[%c0_39, %c0_40], %65 {strides = array<i32>} : memref<16x128xf32, #tpu.memory_space<vmem>>, vector<16x128xf32>,
    } else {
    }
    %c0 = arith.constant 0 : index
    %c0_1 = arith.constant 0 : index
    %3 = vector.load %arg15[%c0, %c0_1] : memref<16x128xf32, #tpu.memory_space<vmem>>, vector<16x128xf32>
    %c0_2 = arith.constant 0 : index
    %c0_3 = arith.constant 0 : index
    %c0_4 = arith.constant 0 : index
    %4 = vector.load %arg2[%c0_2, %c0_3, %c0_4] : memref<1x16x16xf32, #tpu.memory_space<vmem>>, vector<1x16x16xf32>
    %5 = vector.shape_cast %4 : vector<1x16x16xf32> to vector<16x16xf32>
    %c0_5 = arith.constant 0 : index
    %c0_6 = arith.constant 0 : index
    %c0_7 = arith.constant 0 : index
    %6 = vector.load %arg4[%c0_5, %c0_6, %c0_7] : memref<1x16x1xf32, #tpu.memory_space<vmem>>, vector<1x16x1xf32>
    %7 = vector.shape_cast %6 : vector<1x16x1xf32> to vector<16x1xf32>
    %8 = vector.extract_strided_slice %3 {offsets = [0, 0], sizes = [16, 32], strides = [1, 1]} : vector<16x128xf32> to vector<16x32xf32>
    %9 = arith.truncf %8 : vector<16x32xf32> to vector<16x32xbf16>
    %c0_8 = arith.constant 0 : index
    %c0_9 = arith.constant 0 : index
    %c0_10 = arith.constant 0 : index
    %10 = vector.load %arg5[%c0_8, %c0_9, %c0_10] : memref<1x32x128xbf16, #tpu.memory_space<vmem>>, vector<1x32x128xbf16>
    %11 = vector.shape_cast %10 : vector<1x32x128xbf16> to vector<32x128xbf16>
    %cst = arith.constant dense<0.000000e+00> : vector<16x128xf32>
    %12 = tpu.matmul %9, %11, %cst {dimension_numbers = #tpu.dot_dimension_numbers<[1], [0], [0], [1], [0, 0, 1, 1], [], []>} : vector<16x32xbf16>, vector<32x128xbf16>, vector<16x128xf32> -> vector<16x128xf32>
    %c0_11 = arith.constant 0 : index
    %c0_12 = arith.constant 0 : index
    %c0_13 = arith.constant 0 : index
    %13 = vector.load %arg6[%c0_11, %c0_12, %c0_13] : memref<1x1x128xf32, #tpu.memory_space<vmem>>, vector<1x1x128xf32>
    %14 = vector.shape_cast %13 : vector<1x1x128xf32> to vector<1x128xf32>
    %15 = vector.broadcast %14 : vector<1x128xf32> to vector<16x128xf32>
    %16 = arith.addf %12, %15 : vector<16x128xf32>
    %cst_14 = arith.constant 0.000000e+00 : f32
    %17 = vector.broadcast %cst_14 : f32 to vector<16x128xf32>
    %18 = arith.maximumf %16, %17 : vector<16x128xf32>
    %19 = math.absf %16 : vector<16x128xf32>
    %cst_15 = arith.constant 0.000000e+00 : f32
    %20 = vector.broadcast %cst_15 : f32 to vector<16x128xf32>
    %21 = arith.subf %20, %19 : vector<16x128xf32>
    %22 = math.exp %21 : vector<16x128xf32>
    %23 = math.log1p %22 : vector<16x128xf32>
    %24 = arith.addf %18, %23 : vector<16x128xf32>
    %cst_16 = arith.constant 0.693147182 : f32
    %25 = vector.broadcast %cst_16 : f32 to vector<16x128xf32>
    %26 = arith.subf %24, %25 : vector<16x128xf32>
    %cst_17 = arith.constant dense<0.000000e+00> : vector<16x128xf32>
    %27 = tpu.matmul %5, %26, %cst_17 {dimension_numbers = #tpu.dot_dimension_numbers<[1], [0], [0], [1], [0, 0, 1, 1], [], []>} : vector<16x16xf32>, vector<16x128xf32>, vector<16x128xf32> -> vector<16x128xf32>
    %28 = vector.extract_strided_slice %27 {offsets = [0, 0], sizes = [16, 32], strides = [1, 1]} : vector<16x128xf32> to vector<16x32xf32>
    %29 = arith.truncf %28 : vector<16x32xf32> to vector<16x32xbf16>
    %c0_18 = arith.constant 0 : index
    %c0_19 = arith.constant 0 : index
    %c0_20 = arith.constant 0 : index
    %30 = vector.load %arg7[%c0_18, %c0_19, %c0_20] : memref<1x32x128xbf16, #tpu.memory_space<vmem>>, vector<1x32x128xbf16>
    %31 = vector.shape_cast %30 : vector<1x32x128xbf16> to vector<32x128xbf16>
    %cst_21 = arith.constant dense<0.000000e+00> : vector<16x128xf32>
    %32 = tpu.matmul %29, %31, %cst_21 {dimension_numbers = #tpu.dot_dimension_numbers<[1], [0], [0], [1], [0, 0, 1, 1], [], []>} : vector<16x32xbf16>, vector<32x128xbf16>, vector<16x128xf32> -> vector<16x128xf32>
    %c0_22 = arith.constant 0 : index
    %c0_23 = arith.constant 0 : index
    %c0_24 = arith.constant 0 : index
    %33 = vector.load %arg8[%c0_22, %c0_23, %c0_24] : memref<1x1x128xf32, #tpu.memory_space<vmem>>, vector<1x1x128xf32>
    %34 = vector.shape_cast %33 : vector<1x1x128xf32> to vector<1x128xf32>
    %35 = vector.broadcast %34 : vector<1x128xf32> to vector<16x128xf32>
    %36 = arith.addf %32, %35 : vector<16x128xf32>
    %cst_25 = arith.constant 0.000000e+00 : f32
    %37 = vector.broadcast %cst_25 : f32 to vector<16x128xf32>
    %38 = arith.maximumf %36, %37 : vector<16x128xf32>
    %39 = math.absf %36 : vector<16x128xf32>
    %cst_26 = arith.constant 0.000000e+00 : f32
    %40 = vector.broadcast %cst_26 : f32 to vector<16x128xf32>
    %41 = arith.subf %40, %39 : vector<16x128xf32>
    %42 = math.exp %41 : vector<16x128xf32>
    %43 = math.log1p %42 : vector<16x128xf32>
    %44 = arith.addf %38, %43 : vector<16x128xf32>
    %cst_27 = arith.constant 0.693147182 : f32
    %45 = vector.broadcast %cst_27 : f32 to vector<16x128xf32>
    %46 = arith.subf %44, %45 : vector<16x128xf32>
    %47 = vector.broadcast %7 : vector<16x1xf32> to vector<16x128xf32>
    %48 = arith.mulf %47, %46 : vector<16x128xf32>
    %cst_28 = arith.constant 2.000000e+00 : f32
    %49 = vector.broadcast %cst_28 : f32 to vector<16x1xf32>
    %50 = arith.subf %49, %7 : vector<16x1xf32>
    %c0_29 = arith.constant 0 : index
    %c0_30 = arith.constant 0 : index
    %c0_31 = arith.constant 0 : index
    %51 = vector.load %arg9[%c0_29, %c0_30, %c0_31] : memref<1x1x128xf32, #tpu.memory_space<vmem>>, vector<1x1x128xf32>
    %52 = vector.shape_cast %51 : vector<1x1x128xf32> to vector<1x128xf32>
    %53 = vector.broadcast %50 : vector<16x1xf32> to vector<16x128xf32>
    %54 = vector.broadcast %52 : vector<1x128xf32> to vector<16x128xf32>
    %55 = arith.mulf %53, %54 : vector<16x128xf32>
    %56 = arith.addf %48, %55 : vector<16x128xf32>
    %cst_32 = arith.constant 5.000000e-01 : f32
    %57 = vector.broadcast %cst_32 : f32 to vector<16x128xf32>
    %58 = arith.mulf %57, %56 : vector<16x128xf32>
    %59 = arith.addf %3, %58 : vector<16x128xf32>
    %c0_33 = arith.constant 0 : index
    %c0_34 = arith.constant 0 : index
    %60 = vector.load %arg15[%c0_33, %c0_34] : memref<16x128xf32, #tpu.memory_space<vmem>>, vector<16x128xf32>
    tpu.vector_store %arg15[%c0_33, %c0_34], %59 {strides = array<i32>} : memref<16x128xf32, #tpu.memory_space<vmem>>, vector<16x128xf32>,
    %c3_i32 = arith.constant 3 : i32
    %61 = arith.cmpi eq, %arg1, %c3_i32 : i32
    %62 = arith.extui %61 : i1 to i32
    %c0_i32_35 = arith.constant 0 : i32
    %63 = arith.cmpi ne, %62, %c0_i32_35 : i32
    scf.if %63 {
      %64 = vector.broadcast %7 : vector<16x1xf32> to vector<16x128xf32>
      %65 = arith.mulf %59, %64 : vector<16x128xf32>
      %cst_36 = arith.constant dense<0.000000e+00> : vector<128xf32>
      %66 = vector.multi_reduction <add>, %65, %cst_36 [0] : vector<16x128xf32> to vector<128xf32>
      %67 = vector.shape_cast %66 : vector<128xf32> to vector<1x128xf32>
      %68 = vector.extract_strided_slice %67 {offsets = [0, 0], sizes = [1, 32], strides = [1, 1]} : vector<1x128xf32> to vector<1x32xf32>
      %69 = arith.truncf %68 : vector<1x32xf32> to vector<1x32xbf16>
      %c0_37 = arith.constant 0 : index
      %c0_38 = arith.constant 0 : index
      %70 = vector.load %arg10[%c0_37, %c0_38] : memref<32x128xbf16, #tpu.memory_space<vmem>>, vector<32x128xbf16>
      %cst_39 = arith.constant dense<0.000000e+00> : vector<1x128xf32>
      %71 = tpu.matmul %69, %70, %cst_39 {dimension_numbers = #tpu.dot_dimension_numbers<[1], [0], [0], [1], [0, 0, 1, 1], [], []>} : vector<1x32xbf16>, vector<32x128xbf16>, vector<1x128xf32> -> vector<1x128xf32>
      %c0_40 = arith.constant 0 : index
      %c0_41 = arith.constant 0 : index
      %72 = vector.load %arg11[%c0_40, %c0_41] : memref<1x128xf32, #tpu.memory_space<vmem>>, vector<1x128xf32>
      %73 = arith.addf %71, %72 : vector<1x128xf32>
      %cst_42 = arith.constant 0.000000e+00 : f32
      %74 = vector.broadcast %cst_42 : f32 to vector<1x128xf32>
      %75 = arith.maximumf %73, %74 : vector<1x128xf32>
      %76 = math.absf %73 : vector<1x128xf32>
      %cst_43 = arith.constant 0.000000e+00 : f32
      %77 = vector.broadcast %cst_43 : f32 to vector<1x128xf32>
      %78 = arith.subf %77, %76 : vector<1x128xf32>
      %79 = math.exp %78 : vector<1x128xf32>
      %80 = math.log1p %79 : vector<1x128xf32>
      %81 = arith.addf %75, %80 : vector<1x128xf32>
      %cst_44 = arith.constant 0.693147182 : f32
      %82 = vector.broadcast %cst_44 : f32 to vector<1x128xf32>
      %83 = arith.subf %81, %82 : vector<1x128xf32>
      %84 = vector.extract_strided_slice %83 {offsets = [0, 0], sizes = [1, 32], strides = [1, 1]} : vector<1x128xf32> to vector<1x32xf32>
      %c0_45 = arith.constant 0 : index
      %c0_46 = arith.constant 0 : index
      %85 = vector.load %arg12[%c0_45, %c0_46] : memref<32x1xf32, #tpu.memory_space<vmem>>, vector<32x1xf32>
      %cst_47 = arith.constant dense<0.000000e+00> : vector<1x1xf32>
      %86 = tpu.matmul %84, %85, %cst_47 {dimension_numbers = #tpu.dot_dimension_numbers<[1], [0], [0], [1], [0, 0, 1, 1], [], []>} : vector<1x32xf32>, vector<32x1xf32>, vector<1x1xf32> -> vector<1x1xf32>
      %c0_48 = arith.constant 0 : index
      %c0_49 = arith.constant 0 : index
      %87 = vector.load %arg13[%c0_48, %c0_49] : memref<1x1xf32, #tpu.memory_space<vmem>>, vector<1x1xf32>
      %88 = arith.addf %86, %87 : vector<1x1xf32>
      %c0_50 = arith.constant 0 : index
      %c0_51 = arith.constant 0 : index
      %c0_52 = arith.constant 0 : index
      %89 = vector.load %arg14[%c0_50, %c0_51, %c0_52] : memref<1x1x1xf32, #tpu.memory_space<vmem>>, vector<1x1x1xf32>
      %90 = vector.shape_cast %89 : vector<1x1x1xf32> to vector<1x1xf32>
      %91 = vector.shape_cast %88 : vector<1x1xf32> to vector<1x1x1xf32>
      tpu.vector_store %arg14[%c0_50, %c0_51, %c0_52], %91 {strides = array<i32>} : memref<1x1x1xf32, #tpu.memory_space<vmem>>, vector<1x1x1xf32>,
    } else {
    }
    return
  }
  func.func @transform_0(%arg0: i32, %arg1: i32) -> (i32, i32, i32) {
    %c0_i32 = arith.constant 0 : i32
    %c0_i32_0 = arith.constant 0 : i32
    %c0_i32_1 = arith.constant 0 : i32
    return %arg0, %c0_i32, %c0_i32_0 : i32, i32, i32
  }
  func.func @transform_1(%arg0: i32, %arg1: i32) -> (i32, i32, i32) {
    %c0_i32 = arith.constant 0 : i32
    %c0_i32_0 = arith.constant 0 : i32
    %c0_i32_1 = arith.constant 0 : i32
    return %arg0, %c0_i32, %c0_i32_0 : i32, i32, i32
  }
  func.func @transform_2(%arg0: i32, %arg1: i32) -> (i32, i32, i32) {
    %c0_i32 = arith.constant 0 : i32
    %c0_i32_0 = arith.constant 0 : i32
    %c0_i32_1 = arith.constant 0 : i32
    return %arg0, %c0_i32, %c0_i32_0 : i32, i32, i32
  }
  func.func @transform_3(%arg0: i32, %arg1: i32) -> (i32, i32, i32) {
    %c0_i32 = arith.constant 0 : i32
    %c0_i32_0 = arith.constant 0 : i32
    %c0_i32_1 = arith.constant 0 : i32
    return %arg1, %c0_i32, %c0_i32_0 : i32, i32, i32
  }
  func.func @transform_4(%arg0: i32, %arg1: i32) -> (i32, i32, i32) {
    %c0_i32 = arith.constant 0 : i32
    %c0_i32_0 = arith.constant 0 : i32
    %c0_i32_1 = arith.constant 0 : i32
    return %arg1, %c0_i32, %c0_i32_0 : i32, i32, i32
  }
  func.func @transform_5(%arg0: i32, %arg1: i32) -> (i32, i32, i32) {
    %c0_i32 = arith.constant 0 : i32
    %c0_i32_0 = arith.constant 0 : i32
    %c0_i32_1 = arith.constant 0 : i32
    return %arg1, %c0_i32, %c0_i32_0 : i32, i32, i32
  }
  func.func @transform_6(%arg0: i32, %arg1: i32) -> (i32, i32, i32) {
    %c0_i32 = arith.constant 0 : i32
    %c0_i32_0 = arith.constant 0 : i32
    %c0_i32_1 = arith.constant 0 : i32
    return %arg1, %c0_i32, %c0_i32_0 : i32, i32, i32
  }
  func.func @transform_7(%arg0: i32, %arg1: i32) -> (i32, i32, i32) {
    %c0_i32 = arith.constant 0 : i32
    %c0_i32_0 = arith.constant 0 : i32
    %c0_i32_1 = arith.constant 0 : i32
    return %arg1, %c0_i32, %c0_i32_0 : i32, i32, i32
  }
  func.func @transform_8(%arg0: i32, %arg1: i32) -> (i32, i32) {
    %c0_i32 = arith.constant 0 : i32
    %c0_i32_0 = arith.constant 0 : i32
    %c0_i32_1 = arith.constant 0 : i32
    return %c0_i32, %c0_i32_0 : i32, i32
  }
  func.func @transform_9(%arg0: i32, %arg1: i32) -> (i32, i32) {
    %c0_i32 = arith.constant 0 : i32
    %c0_i32_0 = arith.constant 0 : i32
    %c0_i32_1 = arith.constant 0 : i32
    return %c0_i32, %c0_i32_0 : i32, i32
  }
  func.func @transform_10(%arg0: i32, %arg1: i32) -> (i32, i32) {
    %c0_i32 = arith.constant 0 : i32
    %c0_i32_0 = arith.constant 0 : i32
    %c0_i32_1 = arith.constant 0 : i32
    return %c0_i32, %c0_i32_0 : i32, i32
  }
  func.func @transform_11(%arg0: i32, %arg1: i32) -> (i32, i32) {
    %c0_i32 = arith.constant 0 : i32
    %c0_i32_0 = arith.constant 0 : i32
    %c0_i32_1 = arith.constant 0 : i32
    return %c0_i32, %c0_i32_0 : i32, i32
  }
  func.func @transform_12(%arg0: i32, %arg1: i32) -> (i32, i32, i32) {
    %c0_i32 = arith.constant 0 : i32
    %c0_i32_0 = arith.constant 0 : i32
    %c0_i32_1 = arith.constant 0 : i32
    return %arg0, %c0_i32, %c0_i32_0 : i32, i32, i32
  }
}

</mosaic_0001>

<llo_original>
// kernel: disted_hvnet_forward.1
$region0: #{disted_hvnet_forward.1}
  #allocation0 [shape = 'u32[]', space=smem, size = 0x4, offset = 0x4, fixed_abs, tag = 'smem constant byte address 0x4 - core index']
  #allocation1 [shape = 'u32[144,128]{1,0:T(1,128)}', space=vmem, size = 0x12000, scoped, tag = 'internal scratch']
  #allocation2 [shape = 'f32[16,128]{1,0:T(8,128)}', space=vmem, size = 0x2000, scoped, tag = 'scratch operand']
  #allocation3 [shape = 'f32[1,1]{1,0:T(1,128)S(1)}', space=vmem, size = 0x200, scoped, tag = 'scoped memory for disted_hvnet_forward.1']
  %s0 = inlined_call_operand.vmem [shape: f32[2,16,16], index: 0, kind: input, shape index: {}]
  %s1 = inlined_call_operand.vmem [shape: f32[2,16,128], index: 1, kind: input, shape index: {}]
  %s2 = inlined_call_operand.vmem [shape: f32[2,16,1], index: 2, kind: input, shape index: {}]
  %s3 = inlined_call_operand.vmem [shape: bf16[4,32,128], index: 3, kind: input, shape index: {}]
  %s4 = inlined_call_operand.vmem [shape: f32[4,1,128], index: 4, kind: input, shape index: {}]
  %s5 = inlined_call_operand.vmem [shape: bf16[4,32,128], index: 5, kind: input, shape index: {}]
  %s6 = inlined_call_operand.vmem [shape: f32[4,1,128], index: 6, kind: input, shape index: {}]
  %s7 = inlined_call_operand.vmem [shape: f32[4,1,128], index: 7, kind: input, shape index: {}]
  %s8 = inlined_call_operand.vmem [shape: bf16[32,128], index: 8, kind: input, shape index: {}]
  %s9 = inlined_call_operand.vmem [shape: f32[1,128], index: 9, kind: input, shape index: {}]
  %s10 = inlined_call_operand.vmem [shape: f32[32,1], index: 10, kind: input, shape index: {}]
  %s11 = inlined_call_operand.<no memory space> [shape: f32[1,1], index: 11, kind: input, shape index: {}]
  %s12 = inlined_call_operand.vmem [shape: f32[2,1,1], index: 12, kind: output, shape index: {}]
  %s13 = sld [smem:[#allocation0]]
  $region89: #{disted_hvnet_forward.1} parent=0
    _
  %s15 = ssub.s32 1, %s13
  %s16 = scalar_select 0, %s15, %s13
  %v17 = vstv %s11
  %18 = vst [vmem:[#allocation3] sm:$0x1] %v17
  loop: start=0, step=1, limit=10
  $region2: #{disted_hvnet_forward.1} parent=0 // loop_pre_header
    _
  $region3: #{disted_hvnet_forward.1} parent=0 // loop_header
    %s20 = sphi 0, %s24
    %p21 = scmp.ge.s32.totalorder %s20, 10
    %s27 = sphi 0, %s39
    %s28 = sphi 0, %s35
    %s29 = sphi 0, %s27
    %s30 = sphi 0, %s28
    %s31 = sphi 0, %s29
    %s32 = sphi 0, %s30
    %s42 = sphi 0, %s44
    %s45 = sphi 0, %s42
    %s46 = sphi 0, %s45
    %s62 = sphi 0, %s46
    %s68 = sphi 0, %s70
    %s71 = sphi 0, %s68
    %s72 = sphi 0, %s71
    %s88 = sphi 0, %s72
    %s94 = sphi 0, %s96
    %s97 = sphi 0, %s94
    %s98 = sphi 0, %s97
    %s114 = sphi 0, %s98
    %s120 = sphi 0, %s122
    %s123 = sphi 0, %s120
    %s124 = sphi 0, %s123
    %s140 = sphi 0, %s124
    %s146 = sphi 0, %s148
    %s149 = sphi 0, %s146
    %s150 = sphi 0, %s149
    %s166 = sphi 0, %s150
    %s172 = sphi 0, %s174
    %s175 = sphi 0, %s172
    %s176 = sphi 0, %s175
    %s192 = sphi 0, %s176
    %s198 = sphi 0, %s200
    %s201 = sphi 0, %s198
    %s202 = sphi 0, %s201
    %s218 = sphi 0, %s202
    %s224 = sphi 0, %s226
    %s227 = sphi 0, %s224
    %s228 = sphi 0, %s227
    %s244 = sphi 0, %s228
    %s248 = sphi 0, %s248
    %s250 = sphi 0, %s248
    %s251 = sphi 0, %s250
    %s265 = sphi 0, %s251
    %s269 = sphi 0, %s269
    %s271 = sphi 0, %s269
    %s272 = sphi 0, %s271
    %s286 = sphi 0, %s272
    %s290 = sphi 0, %s290
    %s292 = sphi 0, %s290
    %s293 = sphi 0, %s292
    %s307 = sphi 0, %s293
    %s311 = sphi 0, %s311
    %s313 = sphi 0, %s311
    %s314 = sphi 0, %s313
    %s328 = sphi 0, %s314
    %s334 = sphi 0, %s336
    %s337 = sphi 0, %s334
    %s338 = sphi 0, %s337
    %s354 = sphi 0, %s338
  $region4: #{disted_hvnet_forward.1} parent=0 // loop_header_branch
    %23 = sbr.rel (%p21) target = $region8
  $region5: #{disted_hvnet_forward.1} parent=0 // loop_body
    %s25 = ssub.s32 %s20, 1
    %s26 = ssub.s32 %s20, 2
    %s33 = sadd.s32 1, %s28
    %p34 = scmp.ge.s32.totalorder %s33, 4
    %s35 = scalar_select %p34, 0, %s33
    %s36 = sadd.s32 1, %s27
    %s37 = scalar_select %p34, %s36, %s27
    %p38 = scmp.ge.s32.totalorder %s37, 2
    %s39 = scalar_select %p38, 0, %s37
    %s40 = ssub.s32 %s27, %s39
    %p41 = scmp.eq.s32.totalorder %s40, 0
    %s43 = sadd.s32 %s42, 1
    %s44 = scalar_select %p41, %s42, %s43
    %p47 = pneg %p41
    %p48 = scmp.eq.s32.totalorder %s20, 7
    %p49 = por %p47, %p48
    %p50 = scmp.ne.s32.totalorder %s42, %s45
    %p51 = scmp.eq.s32.totalorder %s20, 0
    %p52 = por %p50, %p51
    %p53 = scmp.ne.s32.totalorder %s42, %s45
    %p54 = scmp.eq.s32.totalorder %s25, 7
    %p55 = por %p53, %p54
    %p56 = scmp.ne.s32.totalorder %s45, %s46
    %p57 = scmp.eq.s32.totalorder %s25, 0
    %p58 = por %p56, %p57
    %p59 = scmp.ne.s32.totalorder %s45, %s46
    %p60 = scmp.eq.s32.totalorder %s26, 7
    %p61 = por %p59, %p60
    %p63 = scmp.ne.s32.totalorder %s46, %s62
    %p64 = scmp.eq.s32.totalorder %s26, 0
    %p65 = por %p63, %p64
    %s66 = ssub.s32 %s27, %s39
    %p67 = scmp.eq.s32.totalorder %s66, 0
    %s69 = sadd.s32 %s68, 1
    %s70 = scalar_select %p67, %s68, %s69
    %p73 = pneg %p67
    %p74 = scmp.eq.s32.totalorder %s20, 7
    %p75 = por %p73, %p74
    %p76 = scmp.ne.s32.totalorder %s68, %s71
    %p77 = scmp.eq.s32.totalorder %s20, 0
    %p78 = por %p76, %p77
    %p79 = scmp.ne.s32.totalorder %s68, %s71
    %p80 = scmp.eq.s32.totalorder %s25, 7
    %p81 = por %p79, %p80
    %p82 = scmp.ne.s32.totalorder %s71, %s72
    %p83 = scmp.eq.s32.totalorder %s25, 0
    %p84 = por %p82, %p83
    %p85 = scmp.ne.s32.totalorder %s71, %s72
    %p86 = scmp.eq.s32.totalorder %s26, 7
    %p87 = por %p85, %p86
    %p89 = scmp.ne.s32.totalorder %s72, %s88
    %p90 = scmp.eq.s32.totalorder %s26, 0
    %p91 = por %p89, %p90
    %s92 = ssub.s32 %s27, %s39
    %p93 = scmp.eq.s32.totalorder %s92, 0
    %s95 = sadd.s32 %s94, 1
    %s96 = scalar_select %p93, %s94, %s95
    %p99 = pneg %p93
    %p100 = scmp.eq.s32.totalorder %s20, 7
    %p101 = por %p99, %p100
    %p102 = scmp.ne.s32.totalorder %s94, %s97
    %p103 = scmp.eq.s32.totalorder %s20, 0
    %p104 = por %p102, %p103
    %p105 = scmp.ne.s32.totalorder %s94, %s97
    %p106 = scmp.eq.s32.totalorder %s25, 7
    %p107 = por %p105, %p106
    %p108 = scmp.ne.s32.totalorder %s97, %s98
    %p109 = scmp.eq.s32.totalorder %s25, 0
    %p110 = por %p108, %p109
    %p111 = scmp.ne.s32.totalorder %s97, %s98
    %p112 = scmp.eq.s32.totalorder %s26, 7
    %p113 = por %p111, %p112
    %p115 = scmp.ne.s32.totalorder %s98, %s114
    %p116 = scmp.eq.s32.totalorder %s26, 0
    %p117 = por %p115, %p116
    %s118 = ssub.s32 %s28, %s35
    %p119 = scmp.eq.s32.totalorder %s118, 0
    %s121 = sadd.s32 %s120, 1
    %s122 = scalar_select %p119, %s120, %s121
    %p125 = pneg %p119
    %p126 = scmp.eq.s32.totalorder %s20, 7
    %p127 = por %p125, %p126
    %p128 = scmp.ne.s32.totalorder %s120, %s123
    %p129 = scmp.eq.s32.totalorder %s20, 0
    %p130 = por %p128, %p129
    %p131 = scmp.ne.s32.totalorder %s120, %s123
    %p132 = scmp.eq.s32.totalorder %s25, 7
    %p133 = por %p131, %p132
    %p134 = scmp.ne.s32.totalorder %s123, %s124
    %p135 = scmp.eq.s32.totalorder %s25, 0
    %p136 = por %p134, %p135
    %p137 = scmp.ne.s32.totalorder %s123, %s124
    %p138 = scmp.eq.s32.totalorder %s26, 7
    %p139 = por %p137, %p138
    %p141 = scmp.ne.s32.totalorder %s124, %s140
    %p142 = scmp.eq.s32.totalorder %s26, 0
    %p143 = por %p141, %p142
    %s144 = ssub.s32 %s28, %s35
    %p145 = scmp.eq.s32.totalorder %s144, 0
    %s147 = sadd.s32 %s146, 1
    %s148 = scalar_select %p145, %s146, %s147
    %p151 = pneg %p145
    %p152 = scmp.eq.s32.totalorder %s20, 7
    %p153 = por %p151, %p152
    %p154 = scmp.ne.s32.totalorder %s146, %s149
    %p155 = scmp.eq.s32.totalorder %s20, 0
    %p156 = por %p154, %p155
    %p157 = scmp.ne.s32.totalorder %s146, %s149
    %p158 = scmp.eq.s32.totalorder %s25, 7
    %p159 = por %p157, %p158
    %p160 = scmp.ne.s32.totalorder %s149, %s150
    %p161 = scmp.eq.s32.totalorder %s25, 0
    %p162 = por %p160, %p161
    %p163 = scmp.ne.s32.totalorder %s149, %s150
    %p164 = scmp.eq.s32.totalorder %s26, 7
    %p165 = por %p163, %p164
    %p167 = scmp.ne.s32.totalorder %s150, %s166
    %p168 = scmp.eq.s32.totalorder %s26, 0
    %p169 = por %p167, %p168
    %s170 = ssub.s32 %s28, %s35
    %p171 = scmp.eq.s32.totalorder %s170, 0
    %s173 = sadd.s32 %s172, 1
    %s174 = scalar_select %p171, %s172, %s173
    %p177 = pneg %p171
    %p178 = scmp.eq.s32.totalorder %s20, 7
    %p179 = por %p177, %p178
    %p180 = scmp.ne.s32.totalorder %s172, %s175
    %p181 = scmp.eq.s32.totalorder %s20, 0
    %p182 = por %p180, %p181
    %p183 = scmp.ne.s32.totalorder %s172, %s175
    %p184 = scmp.eq.s32.totalorder %s25, 7
    %p185 = por %p183, %p184
    %p186 = scmp.ne.s32.totalorder %s175, %s176
    %p187 = scmp.eq.s32.totalorder %s25, 0
    %p188 = por %p186, %p187
    %p189 = scmp.ne.s32.totalorder %s175, %s176
    %p190 = scmp.eq.s32.totalorder %s26, 7
    %p191 = por %p189, %p190
    %p193 = scmp.ne.s32.totalorder %s176, %s192
    %p194 = scmp.eq.s32.totalorder %s26, 0
    %p195 = por %p193, %p194
    %s196 = ssub.s32 %s28, %s35
    %p197 = scmp.eq.s32.totalorder %s196, 0
    %s199 = sadd.s32 %s198, 1
    %s200 = scalar_select %p197, %s198, %s199
    %p203 = pneg %p197
    %p204 = scmp.eq.s32.totalorder %s20, 7
    %p205 = por %p203, %p204
    %p206 = scmp.ne.s32.totalorder %s198, %s201
    %p207 = scmp.eq.s32.totalorder %s20, 0
    %p208 = por %p206, %p207
    %p209 = scmp.ne.s32.totalorder %s198, %s201
    %p210 = scmp.eq.s32.totalorder %s25, 7
    %p211 = por %p209, %p210
    %p212 = scmp.ne.s32.totalorder %s201, %s202
    %p213 = scmp.eq.s32.totalorder %s25, 0
    %p214 = por %p212, %p213
    %p215 = scmp.ne.s32.totalorder %s201, %s202
    %p216 = scmp.eq.s32.totalorder %s26, 7
    %p217 = por %p215, %p216
    %p219 = scmp.ne.s32.totalorder %s202, %s218
    %p220 = scmp.eq.s32.totalorder %s26, 0
    %p221 = por %p219, %p220
    %s222 = ssub.s32 %s28, %s35
    %p223 = scmp.eq.s32.totalorder %s222, 0
    %s225 = sadd.s32 %s224, 1
    %s226 = scalar_select %p223, %s224, %s225
    %p229 = pneg %p223
    %p230 = scmp.eq.s32.totalorder %s20, 7
    %p231 = por %p229, %p230
    %p232 = scmp.ne.s32.totalorder %s224, %s227
    %p233 = scmp.eq.s32.totalorder %s20, 0
    %p234 = por %p232, %p233
    %p235 = scmp.ne.s32.totalorder %s224, %s227
    %p236 = scmp.eq.s32.totalorder %s25, 7
    %p237 = por %p235, %p236
    %p238 = scmp.ne.s32.totalorder %s227, %s228
    %p239 = scmp.eq.s32.totalorder %s25, 0
    %p240 = por %p238, %p239
    %p241 = scmp.ne.s32.totalorder %s227, %s228
    %p242 = scmp.eq.s32.totalorder %s26, 7
    %p243 = por %p241, %p242
    %p245 = scmp.ne.s32.totalorder %s228, %s244
    %p246 = scmp.eq.s32.totalorder %s26, 0
    %p247 = por %p245, %p246
    %s249 = sadd.s32 %s248, 1
    %p252 = scmp.eq.s32.totalorder %s20, 7
    %p253 = scmp.ne.s32.totalorder %s248, %s250
    %p254 = scmp.eq.s32.totalorder %s20, 0
    %p255 = por %p253, %p254
    %p256 = scmp.ne.s32.totalorder %s248, %s250
    %p257 = scmp.eq.s32.totalorder %s25, 7
    %p258 = por %p256, %p257
    %p259 = scmp.ne.s32.totalorder %s250, %s251
    %p260 = scmp.eq.s32.totalorder %s25, 0
    %p261 = por %p259, %p260
    %p262 = scmp.ne.s32.totalorder %s250, %s251
    %p263 = scmp.eq.s32.totalorder %s26, 7
    %p264 = por %p262, %p263
    %p266 = scmp.ne.s32.totalorder %s251, %s265
    %p267 = scmp.eq.s32.totalorder %s26, 0
    %p268 = por %p266, %p267
    %s270 = sadd.s32 %s269, 1
    %p273 = scmp.eq.s32.totalorder %s20, 7
    %p274 = scmp.ne.s32.totalorder %s269, %s271
    %p275 = scmp.eq.s32.totalorder %s20, 0
    %p276 = por %p274, %p275
    %p277 = scmp.ne.s32.totalorder %s269, %s271
    %p278 = scmp.eq.s32.totalorder %s25, 7
    %p279 = por %p277, %p278
    %p280 = scmp.ne.s32.totalorder %s271, %s272
    %p281 = scmp.eq.s32.totalorder %s25, 0
    %p282 = por %p280, %p281
    %p283 = scmp.ne.s32.totalorder %s271, %s272
    %p284 = scmp.eq.s32.totalorder %s26, 7
    %p285 = por %p283, %p284
    %p287 = scmp.ne.s32.totalorder %s272, %s286
    %p288 = scmp.eq.s32.totalorder %s26, 0
    %p289 = por %p287, %p288
    %s291 = sadd.s32 %s290, 1
    %p294 = scmp.eq.s32.totalorder %s20, 7
    %p295 = scmp.ne.s32.totalorder %s290, %s292
    %p296 = scmp.eq.s32.totalorder %s20, 0
    %p297 = por %p295, %p296
    %p298 = scmp.ne.s32.totalorder %s290, %s292
    %p299 = scmp.eq.s32.totalorder %s25, 7
    %p300 = por %p298, %p299
    %p301 = scmp.ne.s32.totalorder %s292, %s293
    %p302 = scmp.eq.s32.totalorder %s25, 0
    %p303 = por %p301, %p302
    %p304 = scmp.ne.s32.totalorder %s292, %s293
    %p305 = scmp.eq.s32.totalorder %s26, 7
    %p306 = por %p304, %p305
    %p308 = scmp.ne.s32.totalorder %s293, %s307
    %p309 = scmp.eq.s32.totalorder %s26, 0
    %p310 = por %p308, %p309
    %s312 = sadd.s32 %s311, 1
    %p315 = scmp.eq.s32.totalorder %s20, 7
    %p316 = scmp.ne.s32.totalorder %s311, %s313
    %p317 = scmp.eq.s32.totalorder %s20, 0
    %p318 = por %p316, %p317
    %p319 = scmp.ne.s32.totalorder %s311, %s313
    %p320 = scmp.eq.s32.totalorder %s25, 7
    %p321 = por %p319, %p320
    %p322 = scmp.ne.s32.totalorder %s313, %s314
    %p323 = scmp.eq.s32.totalorder %s25, 0
    %p324 = por %p322, %p323
    %p325 = scmp.ne.s32.totalorder %s313, %s314
    %p326 = scmp.eq.s32.totalorder %s26, 7
    %p327 = por %p325, %p326
    %p329 = scmp.ne.s32.totalorder %s314, %s328
    %p330 = scmp.eq.s32.totalorder %s26, 0
    %p331 = por %p329, %p330
    %s332 = ssub.s32 %s27, %s39
    %p333 = scmp.eq.s32.totalorder %s332, 0
    %s335 = sadd.s32 %s334, 1
    %s336 = scalar_select %p333, %s334, %s335
    %p339 = pneg %p333
    %p340 = scmp.eq.s32.totalorder %s20, 7
    %p341 = por %p339, %p340
    %p342 = scmp.ne.s32.totalorder %s334, %s337
    %p343 = scmp.eq.s32.totalorder %s20, 0
    %p344 = por %p342, %p343
    %p345 = scmp.ne.s32.totalorder %s334, %s337
    %p346 = scmp.eq.s32.totalorder %s25, 7
    %p347 = por %p345, %p346
    %p348 = scmp.ne.s32.totalorder %s337, %s338
    %p349 = scmp.eq.s32.totalorder %s25, 0
    %p350 = por %p348, %p349
    %p351 = scmp.ne.s32.totalorder %s337, %s338
    %p352 = scmp.eq.s32.totalorder %s26, 7
    %p353 = por %p351, %p352
    %p355 = scmp.ne.s32.totalorder %s338, %s354
    %p356 = scmp.eq.s32.totalorder %s26, 0
    %p357 = por %p355, %p356
    %p358 = scmp.le.s32.totalorder 1, %s20
    %p359 = scmp.lt.s32.totalorder %s20, 9
    %p360 = pnand %p358, %p359
    %p361 = pneg %p360
    // Predicated region
    $region9: #{disted_hvnet_forward.1} parent=5 // pred_check
      _
    $region10: #{disted_hvnet_forward.1} parent=5 // pred_check_branch
      %363 = sbr.rel (%p360) target = $region12
    $region11: #{disted_hvnet_forward.1} parent=5 // pred_region
      %s364 = ssub.s32 %s20, 1
      // Predicated region
      $region13: #{disted_hvnet_forward.1} parent=11 // pred_check
        %p365 = pneg %p261
      $region14: #{disted_hvnet_forward.1} parent=11 // pred_check_branch
        %367 = sbr.rel (%p365) target = $region16
      $region15: #{disted_hvnet_forward.1} parent=11 // pred_region
        _
      $region16: #{disted_hvnet_forward.1} parent=11 // pred_fallthru
        _
      // Predicated region
      $region17: #{disted_hvnet_forward.1} parent=11 // pred_check
        %p368 = pneg %p282
      $region18: #{disted_hvnet_forward.1} parent=11 // pred_check_branch
        %370 = sbr.rel (%p368) target = $region20
      $region19: #{disted_hvnet_forward.1} parent=11 // pred_region
        _
      $region20: #{disted_hvnet_forward.1} parent=11 // pred_fallthru
        _
      // Predicated region
      $region21: #{disted_hvnet_forward.1} parent=11 // pred_check
        %p371 = pneg %p303
      $region22: #{disted_hvnet_forward.1} parent=11 // pred_check_branch
        %373 = sbr.rel (%p371) target = $region24
      $region23: #{disted_hvnet_forward.1} parent=11 // pred_region
        _
      $region24: #{disted_hvnet_forward.1} parent=11 // pred_fallthru
        _
      // Predicated region
      $region25: #{disted_hvnet_forward.1} parent=11 // pred_check
        %p374 = pneg %p324
      $region26: #{disted_hvnet_forward.1} parent=11 // pred_check_branch
        %376 = sbr.rel (%p374) target = $region28
      $region27: #{disted_hvnet_forward.1} parent=11 // pred_region
        _
      $region28: #{disted_hvnet_forward.1} parent=11 // pred_fallthru
        _
    $region12: #{disted_hvnet_forward.1} parent=5 // pred_fallthru
      _
    %p377 = scmp.lt.s32.totalorder %s20, 8
    // Predicated region
    $region29: #{disted_hvnet_forward.1} parent=5 // pred_check
      %p378 = pneg %p377
    $region30: #{disted_hvnet_forward.1} parent=5 // pred_check_branch
      %380 = sbr.rel (%p378) target = $region32
    $region31: #{disted_hvnet_forward.1} parent=5 // pred_region
      // Predicated region
      $region33: #{disted_hvnet_forward.1} parent=31 // pred_check
        %p381 = pneg %p52
      $region34: #{disted_hvnet_forward.1} parent=31 // pred_check_branch
        %383 = sbr.rel (%p381) target = $region36
      $region35: #{disted_hvnet_forward.1} parent=31 // pred_region
        %p384 = scmp.lt.s32.totalorder %s27, 1
        %s385 = scalar_select %p384, %s27, 1
        %s386 = smul.addr %s385, 2
        %s387 = smul.addr %s386, 8
        %s388 = scalar_lea.vmem %s0, %s387
      $region36: #{disted_hvnet_forward.1} parent=31 // pred_fallthru
        _
      // Predicated region
      $region37: #{disted_hvnet_forward.1} parent=31 // pred_check
        %p389 = pneg %p78
      $region38: #{disted_hvnet_forward.1} parent=31 // pred_check_branch
        %391 = sbr.rel (%p389) target = $region40
      $region39: #{disted_hvnet_forward.1} parent=31 // pred_region
        %p392 = scmp.lt.s32.totalorder %s27, 1
        %s393 = scalar_select %p392, %s27, 1
        %s394 = smul.addr %s393, 2
        %s395 = smul.addr %s394, 8
        %s396 = scalar_lea.vmem %s1, %s395
      $region40: #{disted_hvnet_forward.1} parent=31 // pred_fallthru
        _
      // Predicated region
      $region41: #{disted_hvnet_forward.1} parent=31 // pred_check
        %p397 = pneg %p104
      $region42: #{disted_hvnet_forward.1} parent=31 // pred_check_branch
        %399 = sbr.rel (%p397) target = $region44
      $region43: #{disted_hvnet_forward.1} parent=31 // pred_region
        %p400 = scmp.lt.s32.totalorder %s27, 1
        %s401 = scalar_select %p400, %s27, 1
        %s402 = smul.addr %s401, 2
        %s403 = smul.addr %s402, 8
        %s404 = scalar_lea.vmem %s2, %s403
      $region44: #{disted_hvnet_forward.1} parent=31 // pred_fallthru
        _
      // Predicated region
      $region45: #{disted_hvnet_forward.1} parent=31 // pred_check
        %p405 = pneg %p130
      $region46: #{disted_hvnet_forward.1} parent=31 // pred_check_branch
        %407 = sbr.rel (%p405) target = $region48
      $region47: #{disted_hvnet_forward.1} parent=31 // pred_region
        %p408 = scmp.lt.s32.totalorder %s28, 3
        %s409 = scalar_select %p408, %s28, 3
        %s410 = smul.addr %s409, 4
        %s411 = smul.addr %s410, 4
        %s412 = scalar_lea.vmem %s3, %s411
      $region48: #{disted_hvnet_forward.1} parent=31 // pred_fallthru
        _
      // Predicated region
      $region49: #{disted_hvnet_forward.1} parent=31 // pred_check
        %p413 = pneg %p156
      $region50: #{disted_hvnet_forward.1} parent=31 // pred_check_branch
        %415 = sbr.rel (%p413) target = $region52
      $region51: #{disted_hvnet_forward.1} parent=31 // pred_region
        %p416 = scmp.lt.s32.totalorder %s28, 3
        %s417 = scalar_select %p416, %s28, 3
        %s418 = scalar_lea.vmem %s4, %s417
      $region52: #{disted_hvnet_forward.1} parent=31 // pred_fallthru
        _
      // Predicated region
      $region53: #{disted_hvnet_forward.1} parent=31 // pred_check
        %p419 = pneg %p182
      $region54: #{disted_hvnet_forward.1} parent=31 // pred_check_branch
        %421 = sbr.rel (%p419) target = $region56
      $region55: #{disted_hvnet_forward.1} parent=31 // pred_region
        %p422 = scmp.lt.s32.totalorder %s28, 3
        %s423 = scalar_select %p422, %s28, 3
        %s424 = smul.addr %s423, 4
        %s425 = smul.addr %s424, 4
        %s426 = scalar_lea.vmem %s5, %s425
      $region56: #{disted_hvnet_forward.1} parent=31 // pred_fallthru
        _
      // Predicated region
      $region57: #{disted_hvnet_forward.1} parent=31 // pred_check
        %p427 = pneg %p208
      $region58: #{disted_hvnet_forward.1} parent=31 // pred_check_branch
        %429 = sbr.rel (%p427) target = $region60
      $region59: #{disted_hvnet_forward.1} parent=31 // pred_region
        %p430 = scmp.lt.s32.totalorder %s28, 3
        %s431 = scalar_select %p430, %s28, 3
        %s432 = scalar_lea.vmem %s6, %s431
      $region60: #{disted_hvnet_forward.1} parent=31 // pred_fallthru
        _
      // Predicated region
      $region61: #{disted_hvnet_forward.1} parent=31 // pred_check
        %p433 = pneg %p234
      $region62: #{disted_hvnet_forward.1} parent=31 // pred_check_branch
        %435 = sbr.rel (%p433) target = $region64
      $region63: #{disted_hvnet_forward.1} parent=31 // pred_region
        %p436 = scmp.lt.s32.totalorder %s28, 3
        %s437 = scalar_select %p436, %s28, 3
        %s438 = scalar_lea.vmem %s7, %s437
      $region64: #{disted_hvnet_forward.1} parent=31 // pred_fallthru
        _
    $region32: #{disted_hvnet_forward.1} parent=5 // pred_fallthru
      _
    %p439 = scmp.le.s32.totalorder 1, %s20
    %p440 = scmp.lt.s32.totalorder %s20, 9
    %p441 = pnand %p439, %p440
    %p442 = pneg %p441
    // Predicated region
    $region65: #{disted_hvnet_forward.1} parent=5 // pred_check
      _
    $region66: #{disted_hvnet_forward.1} parent=5 // pred_check_branch
      %444 = sbr.rel (%p441) target = $region68
    $region67: #{disted_hvnet_forward.1} parent=5 // pred_region
      %s445 = ssub.s32 %s20, 1
      %p446 = scmp.lt.s32.totalorder %s29, 1
      %s447 = scalar_select %p446, %s29, 1
      %s448 = smul.addr %s447, 2
      %s449 = smul.addr %s448, 8
      %s450 = scalar_lea.vmem %s0, %s449
      %p451 = pneg %p58
      %p452 = pneg %p55
      %p453 = scmp.lt.s32.totalorder %s29, 1
      %s454 = scalar_select %p453, %s29, 1
      %s455 = smul.addr %s454, 2
      %s456 = smul.addr %s455, 8
      %s457 = scalar_lea.vmem %s1, %s456
      %p458 = pneg %p84
      %p459 = pneg %p81
      %p460 = scmp.lt.s32.totalorder %s29, 1
      %s461 = scalar_select %p460, %s29, 1
      %s462 = smul.addr %s461, 2
      %s463 = smul.addr %s462, 8
      %s464 = scalar_lea.vmem %s2, %s463
      %p465 = pneg %p110
      %p466 = pneg %p107
      %p467 = scmp.lt.s32.totalorder %s30, 3
      %s468 = scalar_select %p467, %s30, 3
      %s469 = smul.addr %s468, 4
      %s470 = smul.addr %s469, 4
      %s471 = scalar_lea.vmem %s3, %s470
      %p472 = pneg %p136
      %p473 = pneg %p133
      %p474 = scmp.lt.s32.totalorder %s30, 3
      %s475 = scalar_select %p474, %s30, 3
      %s476 = scalar_lea.vmem %s4, %s475
      %p477 = pneg %p162
      %p478 = pneg %p159
      %p479 = scmp.lt.s32.totalorder %s30, 3
      %s480 = scalar_select %p479, %s30, 3
      %s481 = smul.addr %s480, 4
      %s482 = smul.addr %s481, 4
      %s483 = scalar_lea.vmem %s5, %s482
      %p484 = pneg %p188
      %p485 = pneg %p185
      %p486 = scmp.lt.s32.totalorder %s30, 3
      %s487 = scalar_select %p486, %s30, 3
      %s488 = scalar_lea.vmem %s6, %s487
      %p489 = pneg %p214
      %p490 = pneg %p211
      %p491 = scmp.lt.s32.totalorder %s30, 3
      %s492 = scalar_select %p491, %s30, 3
      %s493 = scalar_lea.vmem %s7, %s492
      %p494 = pneg %p240
      %p495 = pneg %p237
      %p496 = pneg %p261
      %p497 = pneg %p258
      %p498 = pneg %p282
      %p499 = pneg %p279
      %p500 = pneg %p303
      %p501 = pneg %p300
      %p502 = pneg %p324
      %p503 = pneg %p321
      %p504 = pneg %p350
      %p505 = pneg %p347
      %p506 = scmp.lt.s32.totalorder %s29, 1
      %s507 = scalar_select %p506, %s29, 1
      %s508 = scalar_lea.vmem %s12, %s507
      %p509 = scmp.lt.s32.totalorder %s29, 1
      %s510 = scalar_select %p509, %s29, 1
      %s511 = smul.addr %s510, 2
      %s512 = smul.addr %s511, 8
      %s513 = scalar_lea.vmem %s0, %s512
      %p514 = scmp.lt.s32.totalorder %s29, 1
      %s515 = scalar_select %p514, %s29, 1
      %s516 = smul.addr %s515, 2
      %s517 = smul.addr %s516, 8
      %s518 = scalar_lea.vmem %s1, %s517
      %p519 = scmp.lt.s32.totalorder %s29, 1
      %s520 = scalar_select %p519, %s29, 1
      %s521 = smul.addr %s520, 2
      %s522 = smul.addr %s521, 8
      %s523 = scalar_lea.vmem %s2, %s522
      %p524 = scmp.lt.s32.totalorder %s30, 3
      %s525 = scalar_select %p524, %s30, 3
      %s526 = smul.addr %s525, 4
      %s527 = smul.addr %s526, 4
      %s528 = scalar_lea.vmem %s3, %s527
      %p529 = scmp.lt.s32.totalorder %s30, 3
      %s530 = scalar_select %p529, %s30, 3
      %s531 = scalar_lea.vmem %s4, %s530
      %p532 = scmp.lt.s32.totalorder %s30, 3
      %s533 = scalar_select %p532, %s30, 3
      %s534 = smul.addr %s533, 4
      %s535 = smul.addr %s534, 4
      %s536 = scalar_lea.vmem %s5, %s535
      %p537 = scmp.lt.s32.totalorder %s30, 3
      %s538 = scalar_select %p537, %s30, 3
      %s539 = scalar_lea.vmem %s6, %s538
      %p540 = scmp.lt.s32.totalorder %s30, 3
      %s541 = scalar_select %p540, %s30, 3
      %s542 = scalar_lea.vmem %s7, %s541
      %p543 = scmp.lt.s32.totalorder %s29, 1
      %s544 = scalar_select %p543, %s29, 1
      %s545 = scalar_lea.vmem %s12, %s544
      %p547 = scmp.eq.s32.totalorder %s30, 0
      // Predicated region
      $region69: #{disted_hvnet_forward.1} parent=67 // pred_check
        %p548 = pneg %p547
      $region70: #{disted_hvnet_forward.1} parent=67 // pred_check_branch
        %550 = sbr.rel (%p548) target = $region72
      $region71: #{disted_hvnet_forward.1} parent=67 // pred_region
        %v551 = vld [vmem:[%s518] sm:$0xff]
        %v552 = vld [vmem:[%s518 + $0x8] sm:$0xff]
        %553 = vst [vmem:[#allocation2] sm:$0xff] %v551
        %554 = vst [vmem:[#allocation2 + $0x8] sm:$0xff] %v552
      $region72: #{disted_hvnet_forward.1} parent=67 // pred_fallthru
        _
      %v555 = vld [vmem:[#allocation2] sm:$0xff]
      %v556 = vld [vmem:[#allocation2 + $0x8] sm:$0xff]
      %v557 = vld [vmem:[%s513] sm:$0xff]
      %v558 = vld [vmem:[%s513 + $0x8] sm:$0xff]
      %v559 = vld [vmem:[%s523] sm:$0xff]
      %v560 = vld [vmem:[%s523 + $0x8] sm:$0xff]
      %v561 = vpack.c.bf16 %v556, %v555
      %v562 = vld [vmem:[%s528] sm:$0xf]
      %v563 = vld [vmem:[%s528 + $0x4] sm:$0xf]
      %v564 = vld [vmem:[%s528 + $0x8] sm:$0xf]
      %v565 = vld [vmem:[%s528 + $0xc] sm:$0xf]
      %v566 = vld [vmem:[%s531] sm:$0x1]
      %v568 = vlaneseq
      %v569 = vshrl.u32 %v568, 7
      %v570 = vsub.s32 0, %v569
      %v571 = vrot.slane %v566, %v570
      %v577 = vunpack.c.l.b16 %v562
      %v578 = vunpack.c.l.b16 %v563
      %v579 = vunpack.c.l.b16 %v564
      %v580 = vunpack.c.l.b16 %v565
      %v581 = vpack.c.b16 %v578, %v577
      %v582 = vpack.c.b16 %v580, %v579
      %vm585 = vcmask 261120
      %v587 = vsel %vm585, %v561, 0
      %589 = vmatprep.subr.bf16.mxu0 0
      %590 = vmatpush1.bf16.msra.mxu0 %v581
      %591 = vmatprep.subr.bf16.mxu0 0
      %592 = vmatpush1.bf16.msra.mxu0 %v582
      %593 = vmatprep.subr.bf16.mxu0 0
      %594 = vmatpush1.bf16.msra.mxu0 0
      %595 = vmatprep.subr.bf16.mxu0 0
      %596 = vmatpush1.bf16.msra.mxu0 0
      %597 = vmatprep.subr.bf16.mxu0 0
      %598 = vmatpush1.bf16.msra.mxu0 0
      %599 = vmatprep.subr.bf16.mxu0 0
      %600 = vmatpush1.bf16.msra.mxu0 0
      %601 = vmatprep.subr.bf16.mxu0 0
      %602 = vmatpush1.bf16.msra.mxu0 0
      %603 = vmatprep.subr.bf16.mxu0 0
      %604 = vmatpush1.bf16.msra.mxu0 0
      %605 = vmatprep.subr.bf16.mxu0 0
      %606 = vmatpush1.bf16.msra.mxu0 0
      %607 = vmatprep.subr.bf16.mxu0 0
      %608 = vmatpush1.bf16.msra.mxu0 0
      %609 = vmatprep.subr.bf16.mxu0 0
      %610 = vmatpush1.bf16.msra.mxu0 0
      %611 = vmatprep.subr.bf16.mxu0 0
      %612 = vmatpush1.bf16.msra.mxu0 0
      %613 = vmatprep.subr.bf16.mxu0 0
      %614 = vmatpush1.bf16.msra.mxu0 0
      %615 = vmatprep.subr.bf16.mxu0 0
      %616 = vmatpush1.bf16.msra.mxu0 0
      %617 = vmatprep.subr.bf16.mxu0 0
      %618 = vmatpush1.bf16.msra.mxu0 0
      %619 = vmatprep.subr.bf16.mxu0 0
      %620 = vmatpush1.bf16.msra.mxu0 0
      %621 = vmatprep.mubr.bf16.mxu0 0
      %622 = vmatmul.mubr.bf16.gmra.mrb[0].mxu0 %v587
      %v623 = vpop.f32.mrb[0].mxu0
      %v624 = vadd.f32 %v571, %v623
      %v625 = vpop.f32.mrb[0].mxu0
      %v626 = vpop.f32.mrb[0].mxu0
      %v627 = vadd.f32 %v571, %v626
      %v628 = vpop.f32.mrb[0].mxu0
      %629 = vdwg.mxu0
      %v630 = vmax.f32 %v624, 0.0
      %v631 = vmax.f32 %v627, 0.0
      %v632 = vand.u32 2147483647, %v624
      %v633 = vand.u32 2147483647, %v627
      %v634 = vsub.f32 0.0, %v632
      %v635 = vsub.f32 0.0, %v633
      %v636 = vmul.f32 %v634, 1.442695
      %v637 = vpow.pop %v636
      %v638 = vmul.f32 %v635, 1.442695
      %v639 = vpow.pop %v638
      %v640 = vadd.f32 %v637, 1.0
      %v641 = vlog2.pop %v640
      %v642 = vmul.f32 %v641, 0.6931472
      %v643 = vmul.f32 -0.5, %v637
      %v644 = vadd.f32 %v643, 1.0
      %v645 = vmul.f32 %v644, %v637
      %v646 = vand.u32 2147483647, %v637
      %vm647 = vcmp.lt.f32.partialorder %v646, 0.0004427343
      %v648 = vsel %vm647, %v645, %v642
      %v649 = vadd.f32 %v639, 1.0
      %v650 = vlog2.pop %v649
      %v651 = vmul.f32 %v650, 0.6931472
      %v652 = vmul.f32 -0.5, %v639
      %v653 = vadd.f32 %v652, 1.0
      %v654 = vmul.f32 %v653, %v639
      %v655 = vand.u32 2147483647, %v639
      %vm656 = vcmp.lt.f32.partialorder %v655, 0.0004427343
      %v657 = vsel %vm656, %v654, %v651
      %v658 = vadd.f32 %v630, %v648
      %v659 = vadd.f32 %v631, %v657
      %v660 = vsub.f32 %v658, 0.6931472
      %v661 = vsub.f32 %v659, 0.6931472
      %vm662 = vcmask 130048
      %v664 = vsel %vm662, %v557, 0
      %v667 = vsel %vm662, %v558, 0
      %669 = vmatprep.subr.mxu0 0.0
      %670 = vmatpush1.msra.mxu0 %v660
      %671 = vmatprep.subr.mxu0 0.0
      %672 = vmatpush1.msra.mxu0 %v661
      %673 = vmatprep.subr.mxu0 0.0
      %674 = vmatpush1.msra.mxu0 0.0
      %675 = vmatprep.subr.mxu0 0.0
      %676 = vmatpush1.msra.mxu0 0.0
      %677 = vmatprep.subr.mxu0 0.0
      %678 = vmatpush1.msra.mxu0 0.0
      %679 = vmatprep.subr.mxu0 0.0
      %680 = vmatpush1.msra.mxu0 0.0
      %681 = vmatprep.subr.mxu0 0.0
      %682 = vmatpush1.msra.mxu0 0.0
      %683 = vmatprep.subr.mxu0 0.0
      %684 = vmatpush1.msra.mxu0 0.0
      %685 = vmatprep.subr.mxu0 0.0
      %686 = vmatpush1.msra.mxu0 0.0
      %687 = vmatprep.subr.mxu0 0.0
      %688 = vmatpush1.msra.mxu0 0.0
      %689 = vmatprep.subr.mxu0 0.0
      %690 = vmatpush1.msra.mxu0 0.0
      %691 = vmatprep.subr.mxu0 0.0
      %692 = vmatpush1.msra.mxu0 0.0
      %693 = vmatprep.subr.mxu0 0.0
      %694 = vmatpush1.msra.mxu0 0.0
      %695 = vmatprep.subr.mxu0 0.0
      %696 = vmatpush1.msra.mxu0 0.0
      %697 = vmatprep.subr.mxu0 0.0
      %698 = vmatpush1.msra.mxu0 0.0
      %699 = vmatprep.subr.mxu0 0.0
      %700 = vmatpush1.msra.mxu0 0.0
      %701 = vmatprep.subr.mxu0 0.0
      %702 = vmatpush1.msra.mxu0 0.0
      %703 = vmatprep.subr.mxu0 0.0
      %704 = vmatpush1.msra.mxu0 0.0
      %705 = vmatprep.subr.mxu0 0.0
      %706 = vmatpush1.msra.mxu0 0.0
      %707 = vmatprep.subr.mxu0 0.0
      %708 = vmatpush1.msra.mxu0 0.0
      %709 = vmatprep.subr.mxu0 0.0
      %710 = vmatpush1.msra.mxu0 0.0
      %711 = vmatprep.subr.mxu0 0.0
      %712 = vmatpush1.msra.mxu0 0.0
      %713 = vmatprep.subr.mxu0 0.0
      %714 = vmatpush1.msra.mxu0 0.0
      %715 = vmatprep.subr.mxu0 0.0
      %716 = vmatpush1.msra.mxu0 0.0
      %717 = vmatprep.subr.mxu0 0.0
      %718 = vmatpush1.msra.mxu0 0.0
      %719 = vmatprep.subr.mxu0 0.0
      %720 = vmatpush1.msra.mxu0 0.0
      %721 = vmatprep.subr.mxu0 0.0
      %722 = vmatpush1.msra.mxu0 0.0
      %723 = vmatprep.subr.mxu0 0.0
      %724 = vmatpush1.msra.mxu0 0.0
      %725 = vmatprep.subr.mxu0 0.0
      %726 = vmatpush1.msra.mxu0 0.0
      %727 = vmatprep.subr.mxu0 0.0
      %728 = vmatpush1.msra.mxu0 0.0
      %729 = vmatprep.subr.mxu0 0.0
      %730 = vmatpush1.msra.mxu0 0.0
      %731 = vmatprep.subr.mxu0 0.0
      %732 = vmatpush1.msra.mxu0 0.0
      %733 = vmatprep.mubr.f32.mxu0 0.0
      %734 = vmatmul.mubr.f32.gmra.mrb[0].mxu0 %v664
      %v735 = vpop.f32.mrb[0].mxu0
      %v736 = vadd.f32 0.0, %v735
      %v737 = vpop.f32.mrb[0].mxu0
      %738 = vmatprep.mubr.f32.mxu0 0.0
      %739 = vmatmul.mubr.f32.gmra.mrb[0].mxu0 %v667
      %v740 = vpop.f32.mrb[0].mxu0
      %v741 = vadd.f32 0.0, %v740
      %v742 = vpop.f32.mrb[0].mxu0
      %743 = vdwg.mxu0
      %v744 = vpack.c.bf16 %v741, %v736
      %v745 = vld [vmem:[%s536] sm:$0xf]
      %v746 = vld [vmem:[%s536 + $0x4] sm:$0xf]
      %v747 = vld [vmem:[%s536 + $0x8] sm:$0xf]
      %v748 = vld [vmem:[%s536 + $0xc] sm:$0xf]
      %v749 = vld [vmem:[%s539] sm:$0x1]
      %v751 = vlaneseq
      %v752 = vshrl.u32 %v751, 7
      %v753 = vsub.s32 0, %v752
      %v754 = vrot.slane %v749, %v753
      %v760 = vunpack.c.l.b16 %v745
      %v761 = vunpack.c.l.b16 %v746
      %v762 = vunpack.c.l.b16 %v747
      %v763 = vunpack.c.l.b16 %v748
      %v764 = vpack.c.b16 %v761, %v760
      %v765 = vpack.c.b16 %v763, %v762
      %v769 = vsel %vm585, %v744, 0
      %771 = vmatprep.subr.bf16.mxu0 0
      %772 = vmatpush1.bf16.msra.mxu0 %v764
      %773 = vmatprep.subr.bf16.mxu0 0
      %774 = vmatpush1.bf16.msra.mxu0 %v765
      %775 = vmatprep.subr.bf16.mxu0 0
      %776 = vmatpush1.bf16.msra.mxu0 0
      %777 = vmatprep.subr.bf16.mxu0 0
      %778 = vmatpush1.bf16.msra.mxu0 0
      %779 = vmatprep.subr.bf16.mxu0 0
      %780 = vmatpush1.bf16.msra.mxu0 0
      %781 = vmatprep.subr.bf16.mxu0 0
      %782 = vmatpush1.bf16.msra.mxu0 0
      %783 = vmatprep.subr.bf16.mxu0 0
      %784 = vmatpush1.bf16.msra.mxu0 0
      %785 = vmatprep.subr.bf16.mxu0 0
      %786 = vmatpush1.bf16.msra.mxu0 0
      %787 = vmatprep.subr.bf16.mxu0 0
      %788 = vmatpush1.bf16.msra.mxu0 0
      %789 = vmatprep.subr.bf16.mxu0 0
      %790 = vmatpush1.bf16.msra.mxu0 0
      %791 = vmatprep.subr.bf16.mxu0 0
      %792 = vmatpush1.bf16.msra.mxu0 0
      %793 = vmatprep.subr.bf16.mxu0 0
      %794 = vmatpush1.bf16.msra.mxu0 0
      %795 = vmatprep.subr.bf16.mxu0 0
      %796 = vmatpush1.bf16.msra.mxu0 0
      %797 = vmatprep.subr.bf16.mxu0 0
      %798 = vmatpush1.bf16.msra.mxu0 0
      %799 = vmatprep.subr.bf16.mxu0 0
      %800 = vmatpush1.bf16.msra.mxu0 0
      %801 = vmatprep.subr.bf16.mxu0 0
      %802 = vmatpush1.bf16.msra.mxu0 0
      %803 = vmatprep.mubr.bf16.mxu0 0
      %804 = vmatmul.mubr.bf16.gmra.mrb[0].mxu0 %v769
      %v805 = vpop.f32.mrb[0].mxu0
      %v806 = vadd.f32 %v754, %v805
      %v807 = vpop.f32.mrb[0].mxu0
      %v808 = vpop.f32.mrb[0].mxu0
      %v809 = vadd.f32 %v754, %v808
      %v810 = vpop.f32.mrb[0].mxu0
      %811 = vdwg.mxu0
      %v812 = vmax.f32 %v806, 0.0
      %v813 = vmax.f32 %v809, 0.0
      %v814 = vand.u32 2147483647, %v806
      %v815 = vand.u32 2147483647, %v809
      %v816 = vsub.f32 0.0, %v814
      %v817 = vsub.f32 0.0, %v815
      %v818 = vmul.f32 %v816, 1.442695
      %v819 = vpow.pop %v818
      %v820 = vmul.f32 %v817, 1.442695
      %v821 = vpow.pop %v820
      %v822 = vadd.f32 %v819, 1.0
      %v823 = vlog2.pop %v822
      %v824 = vmul.f32 %v823, 0.6931472
      %v825 = vmul.f32 -0.5, %v819
      %v826 = vadd.f32 %v825, 1.0
      %v827 = vmul.f32 %v826, %v819
      %v828 = vand.u32 2147483647, %v819
      %vm829 = vcmp.lt.f32.partialorder %v828, 0.0004427343
      %v830 = vsel %vm829, %v827, %v824
      %v831 = vadd.f32 %v821, 1.0
      %v832 = vlog2.pop %v831
      %v833 = vmul.f32 %v832, 0.6931472
      %v834 = vmul.f32 -0.5, %v821
      %v835 = vadd.f32 %v834, 1.0
      %v836 = vmul.f32 %v835, %v821
      %v837 = vand.u32 2147483647, %v821
      %vm838 = vcmp.lt.f32.partialorder %v837, 0.0004427343
      %v839 = vsel %vm838, %v836, %v833
      %v840 = vadd.f32 %v812, %v830
      %v841 = vadd.f32 %v813, %v839
      %v842 = vsub.f32 %v840, 0.6931472
      %v843 = vsub.f32 %v841, 0.6931472
      %845 = vset.pattern.permute.xlu0 0
      %846 = vperm.xlu0 %845, %v559
      %v847 = vpop.permute.xlu0 %846
      %850 = vset.pattern.permute.xlu0 0
      %851 = vperm.xlu0 %850, %v560
      %v852 = vpop.permute.xlu0 %851
      %v854 = vmul.f32 %v847, %v842
      %v855 = vmul.f32 %v852, %v843
      %v856 = vsub.f32 2.0, %v559
      %v857 = vsub.f32 2.0, %v560
      %v858 = vld [vmem:[%s542] sm:$0x1]
      %860 = vset.pattern.permute.xlu0 0
      %861 = vperm.xlu0 %860, %v856
      %v862 = vpop.permute.xlu0 %861
      %865 = vset.pattern.permute.xlu0 0
      %866 = vperm.xlu0 %865, %v857
      %v867 = vpop.permute.xlu0 %866
      %v870 = vlaneseq
      %v871 = vshrl.u32 %v870, 7
      %v872 = vsub.s32 0, %v871
      %v873 = vrot.slane %v858, %v872
      %v875 = vmul.f32 %v862, %v873
      %v876 = vmul.f32 %v867, %v873
      %v877 = vadd.f32 %v854, %v875
      %v878 = vadd.f32 %v855, %v876
      %v879 = vmul.f32 %v877, 0.5
      %v880 = vmul.f32 %v878, 0.5
      %v881 = vadd.f32 %v555, %v879
      %v882 = vadd.f32 %v556, %v880
      %883 = vst [vmem:[#allocation2] sm:$0xff] %v881
      %884 = vst [vmem:[#allocation2 + $0x8] sm:$0xff] %v882
      %p885 = scmp.eq.s32.totalorder %s30, 3
      // Predicated region
      $region73: #{disted_hvnet_forward.1} parent=67 // pred_check
        %p886 = pneg %p885
      $region74: #{disted_hvnet_forward.1} parent=67 // pred_check_branch
        %888 = sbr.rel (%p886) target = $region76
      $region75: #{disted_hvnet_forward.1} parent=67 // pred_region
        %v889 = vmul.f32 %v881, %v847
        %v890 = vmul.f32 %v882, %v852
        %v891 = vadd.f32 %v889, %v890
        %v892 = vrot.slane %v891, 4
        %v893 = vadd.f32 %v891, %v892
        %v894 = vrot.slane %v893, 2
        %v895 = vadd.f32 %v893, %v894
        %v896 = vrot.slane %v895, 1
        %v897 = vadd.f32 %v895, %v896
        %v898 = vpack.c.bf16 %v897, %v897
        %v899 = vld [vmem:[%s8] sm:$0xf]
        %v900 = vld [vmem:[%s8 + $0x4] sm:$0xf]
        %v901 = vld [vmem:[%s8 + $0x8] sm:$0xf]
        %v902 = vld [vmem:[%s8 + $0xc] sm:$0xf]
        %v903 = vld [vmem:[%s9] sm:$0x1]
        %v908 = vunpack.c.l.b16 %v899
        %v909 = vunpack.c.l.b16 %v900
        %v910 = vunpack.c.l.b16 %v901
        %v911 = vunpack.c.l.b16 %v902
        %v912 = vpack.c.b16 %v909, %v908
        %v913 = vpack.c.b16 %v911, %v910
        %v917 = vsel %vm585, %v898, 0
        %919 = vmatprep.subr.bf16.mxu0 0
        %920 = vmatpush1.bf16.msra.mxu0 %v912
        %921 = vmatprep.subr.bf16.mxu0 0
        %922 = vmatpush1.bf16.msra.mxu0 %v913
        %923 = vmatprep.subr.bf16.mxu0 0
        %924 = vmatpush1.bf16.msra.mxu0 0
        %925 = vmatprep.subr.bf16.mxu0 0
        %926 = vmatpush1.bf16.msra.mxu0 0
        %927 = vmatprep.subr.bf16.mxu0 0
        %928 = vmatpush1.bf16.msra.mxu0 0
        %929 = vmatprep.subr.bf16.mxu0 0
        %930 = vmatpush1.bf16.msra.mxu0 0
        %931 = vmatprep.subr.bf16.mxu0 0
        %932 = vmatpush1.bf16.msra.mxu0 0
        %933 = vmatprep.subr.bf16.mxu0 0
        %934 = vmatpush1.bf16.msra.mxu0 0
        %935 = vmatprep.subr.bf16.mxu0 0
        %936 = vmatpush1.bf16.msra.mxu0 0
        %937 = vmatprep.subr.bf16.mxu0 0
        %938 = vmatpush1.bf16.msra.mxu0 0
        %939 = vmatprep.subr.bf16.mxu0 0
        %940 = vmatpush1.bf16.msra.mxu0 0
        %941 = vmatprep.subr.bf16.mxu0 0
        %942 = vmatpush1.bf16.msra.mxu0 0
        %943 = vmatprep.subr.bf16.mxu0 0
        %944 = vmatpush1.bf16.msra.mxu0 0
        %945 = vmatprep.subr.bf16.mxu0 0
        %946 = vmatpush1.bf16.msra.mxu0 0
        %947 = vmatprep.subr.bf16.mxu0 0
        %948 = vmatpush1.bf16.msra.mxu0 0
        %949 = vmatprep.subr.bf16.mxu0 0
        %950 = vmatpush1.bf16.msra.mxu0 0
        %951 = vmatprep.mubr.bf16.mxu0 0
        %952 = vmatmul.mubr.bf16.gmra.mrb[0].mxu0 %v917
        %v953 = vpop.f32.mrb[0].mxu0
        %v954 = vadd.f32 %v903, %v953
        %v955 = vpop.f32.mrb[0].mxu0
        %v956 = vpop.f32.mrb[0].mxu0
        %v957 = vpop.f32.mrb[0].mxu0
        %958 = vdwg.mxu0
        %v959 = vmax.f32 %v954, 0.0
        %v960 = vand.u32 2147483647, %v954
        %v961 = vsub.f32 0.0, %v960
        %v962 = vmul.f32 %v961, 1.442695
        %v963 = vpow.pop %v962
        %v964 = vadd.f32 %v963, 1.0
        %v965 = vlog2.pop %v964
        %v966 = vmul.f32 %v965, 0.6931472
        %v967 = vmul.f32 -0.5, %v963
        %v968 = vadd.f32 %v967, 1.0
        %v969 = vmul.f32 %v968, %v963
        %v970 = vand.u32 2147483647, %v963
        %vm971 = vcmp.lt.f32.partialorder %v970, 0.0004427343
        %v972 = vsel %vm971, %v969, %v966
        %v973 = vadd.f32 %v959, %v972
        %v974 = vsub.f32 %v973, 0.6931472
        %v975 = vld [vmem:[%s10] sm:$0xff]
        %v976 = vld [vmem:[%s10 + $0x8] sm:$0xff]
        %v977 = vld [vmem:[%s10 + $0x10] sm:$0xff]
        %v978 = vld [vmem:[%s10 + $0x18] sm:$0xff]
        %v979 = vld [vmem:[#allocation3] sm:$0x1]
        %v981 = vsel %vm585, %v974, 0
        %983 = vmatprep.subr.mxu0 0.0
        %984 = vmatpush1.msra.mxu0 %v975
        %985 = vmatprep.subr.mxu0 0.0
        %986 = vmatpush1.msra.mxu0 %v976
        %987 = vmatprep.subr.mxu0 0.0
        %988 = vmatpush1.msra.mxu0 %v977
        %989 = vmatprep.subr.mxu0 0.0
        %990 = vmatpush1.msra.mxu0 %v978
        %991 = vmatprep.subr.mxu0 0.0
        %992 = vmatpush1.msra.mxu0 0.0
        %993 = vmatprep.subr.mxu0 0.0
        %994 = vmatpush1.msra.mxu0 0.0
        %995 = vmatprep.subr.mxu0 0.0
        %996 = vmatpush1.msra.mxu0 0.0
        %997 = vmatprep.subr.mxu0 0.0
        %998 = vmatpush1.msra.mxu0 0.0
        %999 = vmatprep.subr.mxu0 0.0
        %1000 = vmatpush1.msra.mxu0 0.0
        %1001 = vmatprep.subr.mxu0 0.0
        %1002 = vmatpush1.msra.mxu0 0.0
        %1003 = vmatprep.subr.mxu0 0.0
        %1004 = vmatpush1.msra.mxu0 0.0
        %1005 = vmatprep.subr.mxu0 0.0
        %1006 = vmatpush1.msra.mxu0 0.0
        %1007 = vmatprep.subr.mxu0 0.0
        %1008 = vmatpush1.msra.mxu0 0.0
        %1009 = vmatprep.subr.mxu0 0.0
        %1010 = vmatpush1.msra.mxu0 0.0
        %1011 = vmatprep.subr.mxu0 0.0
        %1012 = vmatpush1.msra.mxu0 0.0
        %1013 = vmatprep.subr.mxu0 0.0
        %1014 = vmatpush1.msra.mxu0 0.0
        %1015 = vmatprep.subr.mxu0 0.0
        %1016 = vmatpush1.msra.mxu0 0.0
        %1017 = vmatprep.subr.mxu0 0.0
        %1018 = vmatpush1.msra.mxu0 0.0
        %1019 = vmatprep.subr.mxu0 0.0
        %1020 = vmatpush1.msra.mxu0 0.0
        %1021 = vmatprep.subr.mxu0 0.0
        %1022 = vmatpush1.msra.mxu0 0.0
        %1023 = vmatprep.subr.mxu0 0.0
        %1024 = vmatpush1.msra.mxu0 0.0
        %1025 = vmatprep.subr.mxu0 0.0
        %1026 = vmatpush1.msra.mxu0 0.0
        %1027 = vmatprep.subr.mxu0 0.0
        %1028 = vmatpush1.msra.mxu0 0.0
        %1029 = vmatprep.subr.mxu0 0.0
        %1030 = vmatpush1.msra.mxu0 0.0
        %1031 = vmatprep.subr.mxu0 0.0
        %1032 = vmatpush1.msra.mxu0 0.0
        %1033 = vmatprep.subr.mxu0 0.0
        %1034 = vmatpush1.msra.mxu0 0.0
        %1035 = vmatprep.subr.mxu0 0.0
        %1036 = vmatpush1.msra.mxu0 0.0
        %1037 = vmatprep.subr.mxu0 0.0
        %1038 = vmatpush1.msra.mxu0 0.0
        %1039 = vmatprep.subr.mxu0 0.0
        %1040 = vmatpush1.msra.mxu0 0.0
        %1041 = vmatprep.subr.mxu0 0.0
        %1042 = vmatpush1.msra.mxu0 0.0
        %1043 = vmatprep.subr.mxu0 0.0
        %1044 = vmatpush1.msra.mxu0 0.0
        %1045 = vmatprep.subr.mxu0 0.0
        %1046 = vmatpush1.msra.mxu0 0.0
        %1047 = vmatprep.mubr.f32.mxu0 0.0
        %1048 = vmatmul.mubr.f32.gmra.mrb[0].mxu0 %v981
        %v1049 = vpop.f32.mrb[0].mxu0
        %v1050 = vadd.f32 %v979, %v1049
        %v1051 = vpop.f32.mrb[0].mxu0
        %1052 = vdwg.mxu0
        %vm1053 = vcmask 0
        %1054 = vst.msk [vmem:[%s545] sm:$0x1] %vm1053, %v1050
      $region76: #{disted_hvnet_forward.1} parent=67 // pred_fallthru
        _
      %p1055 = scmp.lt.s32.totalorder %s29, 1
      %s1056 = scalar_select %p1055, %s29, 1
      %s1057 = scalar_lea.vmem %s12, %s1056
      // Predicated region
      $region77: #{disted_hvnet_forward.1} parent=67 // pred_check
        %p1058 = pneg %p347
      $region78: #{disted_hvnet_forward.1} parent=67 // pred_check_branch
        %1060 = sbr.rel (%p1058) target = $region80
      $region79: #{disted_hvnet_forward.1} parent=67 // pred_region
        _
      $region80: #{disted_hvnet_forward.1} parent=67 // pred_fallthru
        _
    $region68: #{disted_hvnet_forward.1} parent=5 // pred_fallthru
      _
    %p1061 = scmp.le.s32.totalorder 2, %s20
    // Predicated region
    $region81: #{disted_hvnet_forward.1} parent=5 // pred_check
      %p1062 = pneg %p1061
    $region82: #{disted_hvnet_forward.1} parent=5 // pred_check_branch
      %1064 = sbr.rel (%p1062) target = $region84
    $region83: #{disted_hvnet_forward.1} parent=5 // pred_region
      %s1065 = ssub.s32 %s20, 2
      // Predicated region
      $region85: #{disted_hvnet_forward.1} parent=83 // pred_check
        %p1066 = pneg %p353
      $region86: #{disted_hvnet_forward.1} parent=83 // pred_check_branch
        %1068 = sbr.rel (%p1066) target = $region88
      $region87: #{disted_hvnet_forward.1} parent=83 // pred_region
        %p1069 = scmp.lt.s32.totalorder %s31, 1
        %s1070 = scalar_select %p1069, %s31, 1
        %s1071 = scalar_lea.vmem %s12, %s1070
      $region88: #{disted_hvnet_forward.1} parent=83 // pred_fallthru
        _
    $region84: #{disted_hvnet_forward.1} parent=5 // pred_fallthru
      _
  $region6: #{disted_hvnet_forward.1} parent=0 // loop_footer
    %s24 = sadd.s32 1, %s20
  $region7: #{disted_hvnet_forward.1} parent=0 // loop_footer_branch
    %19 = sbr.rel target = $region3
  $region8: #{disted_hvnet_forward.1} parent=0 // loop_exit
    _

</llo_original>
